<compile_context>
chip_gen: v7x
topology: tpu7x:2x2x1
jax: 0.10.0
libtpu: 0.0.40
codegen_flags: <defaults>
</compile_context>

<pallas_src>
import jax
import jax.numpy as jnp
from jax.experimental import pallas as pl
from jax.experimental.pallas import tpu as pltpu
import numpy as np

LANE = 128  # lane-dense output slab width


def critic_kernel(s_ref, a_ref, gamma_ref, beta_ref,
                  w1_ref, b1_ref, w2h_ref, w2a_ref, b2_ref,
                  w3_ref, b3_ref, out_ref):
    # ---- BatchNorm1d (training mode: batch statistics, biased variance) ----
    x = s_ref[...].astype(jnp.float32)
    mean = jnp.mean(x, axis=0, keepdims=True)
    var = jnp.mean((x - mean) ** 2, axis=0, keepdims=True)
    xn = (x - mean) * jax.lax.rsqrt(var + 1e-5)
    xn = xn * gamma_ref[...] + beta_ref[...]

    # ---- fc1 + ReLU (MXU) ----
    h1 = jnp.dot(xn, w1_ref[...], preferred_element_type=jnp.float32) + b1_ref[...]
    h1 = jnp.maximum(h1, 0.0)

    # ---- fc2 over concat([h1, actions]) + ReLU  (split matmul == concat) ----
    a = a_ref[...].astype(jnp.float32)
    h2 = (jnp.dot(h1, w2h_ref[...], preferred_element_type=jnp.float32)
          + jnp.dot(a, w2a_ref[...], preferred_element_type=jnp.float32)
          + b2_ref[...])
    h2 = jnp.maximum(h2, 0.0)

    # ---- fc3 (out_features=1): VPU multiply + lane reduce, no N=1 MXU pass ----
    q = jnp.sum(h2 * w3_ref[...], axis=-1, keepdims=True) + b3_ref[0, 0]   # [B, 1]

    # Lane-dense store: broadcast into the 128-lane slab (unmasked vst).
    out_ref[...] = jnp.broadcast_to(q, out_ref.shape).astype(out_ref.dtype)


def critic_forward_stacked(states, actions, params):
    """N independent forward passes fused into one pallas_call.

    states : [N, B, F], actions : [N, B, A]  ->  q : [N, B, 1]
    Each grid step processes one forward pass (own BatchNorm batch stats);
    weights stay VMEM-resident via constant index_maps; batch-of-forwards
    axis is marked 'parallel' (megacore sharding on v7x).
    """
    N, B, F = states.shape
    A = actions.shape[-1]
    gamma, beta, w1, b1, w2h, w2a, b2, w3_row, b3 = params
    FC1 = w1.shape[1]
    FC2 = w2h.shape[1]

    s2 = states.reshape(N * B, F).astype(jnp.float32)
    a2 = actions.reshape(N * B, A).astype(jnp.float32)

    def const_spec(shape):
        # Whole-array block, same block every grid step -> stays resident.
        return pl.BlockSpec(shape, lambda i: (0, 0))

    out_slab = pl.pallas_call(
        critic_kernel,
        out_shape=jax.ShapeDtypeStruct((N * B, LANE), jnp.float32),
        grid=(N,),
        in_specs=[
            pl.BlockSpec((B, F), lambda i: (i, 0)),              # states tile
            pl.BlockSpec((B, A), lambda i: (i, 0)),              # actions tile
            const_spec((1, F)),                                  # gamma
            const_spec((1, F)),                                  # beta
            const_spec((F, FC1)),                                # w1
            const_spec((1, FC1)),                                # b1
            const_spec((FC1, FC2)),                              # w2h
            const_spec((A, FC2)),                                # w2a
            const_spec((1, FC2)),                                # b2
            const_spec((1, FC2)),                                # w3 (row vector)
            pl.BlockSpec(memory_space=pltpu.MemorySpace.SMEM),   # b3 scalar
        ],
        out_specs=pl.BlockSpec((B, LANE), lambda i: (i, 0)),
        compiler_params=pltpu.CompilerParams(
            dimension_semantics=("parallel",)),
    )(s2, a2, gamma, beta, w1, b1, w2h, w2a, b2, w3_row, b3)

    return out_slab[:, :1].reshape(N, B, 1)


def critic_forward(states, actions, params):
    """Single forward: states [B, F], actions [B, A] -> q [B, 1]."""
    return critic_forward_stacked(states[None], actions[None], params)[0]


def make_params(key, nb_features, nb_actions, fc1, fc2):
    """Deterministic synthetic init mimicking the module's reset_parameters."""
    ks = jax.random.split(key, 8)
    lim1 = 1.0 / np.sqrt(fc1)          # hidden_init uses weight.size()[0] == out_features
    lim2 = 1.0 / np.sqrt(fc2)
    gamma = jnp.ones((1, nb_features), jnp.float32)     # BatchNorm1d affine defaults
    beta = jnp.zeros((1, nb_features), jnp.float32)
    # weights stored as [in_features, out_features]
    w1 = jax.random.uniform(ks[0], (nb_features, fc1), jnp.float32, -lim1, lim1)
    b1 = jax.random.uniform(ks[1], (1, fc1), jnp.float32, -lim1, lim1)
    w2h = jax.random.uniform(ks[2], (fc1, fc2), jnp.float32, -lim2, lim2)
    w2a = jax.random.uniform(ks[3], (nb_actions, fc2), jnp.float32, -lim2, lim2)
    b2 = jax.random.uniform(ks[4], (1, fc2), jnp.float32, -lim2, lim2)
    w3_row = jax.random.uniform(ks[5], (1, fc2), jnp.float32, -0.003, 0.003)  # fc3 as row
    b3 = jax.random.uniform(ks[6], (1, 1), jnp.float32, -0.003, 0.003)
    return (gamma, beta, w1, b1, w2h, w2a, b2, w3_row, b3)


def reference_forward(states, actions, params):
    """Pure-JAX reference of the same math, for a correctness check."""
    (gamma, beta, w1, b1, w2h, w2a, b2, w3_row, b3) = params
    x = states.astype(jnp.float32)
    mean = jnp.mean(x, axis=0, keepdims=True)
    var = jnp.mean((x - mean) ** 2, axis=0, keepdims=True)
    x = (x - mean) / jnp.sqrt(var + 1e-5) * gamma + beta
    x = jnp.maximum(x @ w1 + b1, 0.0)
    x = jnp.maximum(x @ w2h + actions @ w2a + b2, 0.0)
    return jnp.sum(x * w3_row, axis=-1, keepdims=True) + b3


if __name__ == "__main__":
    # Small shapes consistent with the module: [batch, features], [batch, actions]
    B, NB_FEATURES, NB_ACTIONS = 8, 32, 8
    FC1, FC2 = 64, 32
    N_CALLS = 4   # number of independent forward passes fused into one pallas_call

    key = jax.random.PRNGKey(0)
    k_s, k_a, k_p, k_ss, k_aa = jax.random.split(key, 5)
    params = make_params(k_p, NB_FEATURES, NB_ACTIONS, FC1, FC2)

    # ---- single forward pass ----
    states = jax.random.normal(k_s, (B, NB_FEATURES), jnp.float32)
    actions = jax.random.normal(k_a, (B, NB_ACTIONS), jnp.float32)
    q = critic_forward(states, actions, params)
    jax.block_until_ready(q)
    q_ref = reference_forward(states, actions, params)
    np.testing.assert_allclose(np.asarray(q), np.asarray(q_ref), rtol=1e-5, atol=1e-5)

    # ---- many forward passes fused into one call (grid over the leading axis) ----
    states_n = jax.random.normal(k_ss, (N_CALLS, B, NB_FEATURES), jnp.float32)
    actions_n = jax.random.normal(k_aa, (N_CALLS, B, NB_ACTIONS), jnp.float32)
    q_n = critic_forward_stacked(states_n, actions_n, params)
    jax.block_until_ready(q_n)
    q_n_ref = jax.vmap(lambda s, a: reference_forward(s, a, params))(states_n, actions_n)
    np.testing.assert_allclose(np.asarray(q_n), np.asarray(q_n_ref), rtol=1e-5, atol=1e-5)

    print("KERNEL_OK")
</pallas_src>

<mosaic_0001>
module attributes {stable_mosaic.version = 11 : i64} {
  func.func @critic_kernel(%arg0: i32, %arg1: memref<8x32xf32, #tpu.memory_space<vmem>>, %arg2: memref<8x8xf32, #tpu.memory_space<vmem>>, %arg3: memref<1x32xf32, #tpu.memory_space<vmem>>, %arg4: memref<1x32xf32, #tpu.memory_space<vmem>>, %arg5: memref<32x64xf32, #tpu.memory_space<vmem>>, %arg6: memref<1x64xf32, #tpu.memory_space<vmem>>, %arg7: memref<64x32xf32, #tpu.memory_space<vmem>>, %arg8: memref<8x32xf32, #tpu.memory_space<vmem>>, %arg9: memref<1x32xf32, #tpu.memory_space<vmem>>, %arg10: memref<1x32xf32, #tpu.memory_space<vmem>>, %arg11: memref<1x1xf32, #tpu.memory_space<smem>>, %arg12: memref<8x128xf32, #tpu.memory_space<vmem>>) attributes {dimension_semantics = [#tpu.dimension_semantics<parallel>], iteration_bounds = array<i64: 1>, scalar_prefetch = 0 : i64, scratch_operands = 0 : i64, tpu.core_type = #tpu.core_type<tc>, window_params = [{transform_indices = @transform_0, window_bounds = array<i64: 8, 32>}, {transform_indices = @transform_1, window_bounds = array<i64: 8, 8>}, {pipeline_mode = #tpu.pipeline_mode<synchronous>, transform_indices = @transform_2, window_bounds = array<i64: 1, 32>}, {pipeline_mode = #tpu.pipeline_mode<synchronous>, transform_indices = @transform_3, window_bounds = array<i64: 1, 32>}, {pipeline_mode = #tpu.pipeline_mode<synchronous>, transform_indices = @transform_4, window_bounds = array<i64: 32, 64>}, {pipeline_mode = #tpu.pipeline_mode<synchronous>, transform_indices = @transform_5, window_bounds = array<i64: 1, 64>}, {pipeline_mode = #tpu.pipeline_mode<synchronous>, transform_indices = @transform_6, window_bounds = array<i64: 64, 32>}, {pipeline_mode = #tpu.pipeline_mode<synchronous>, transform_indices = @transform_7, window_bounds = array<i64: 8, 32>}, {pipeline_mode = #tpu.pipeline_mode<synchronous>, transform_indices = @transform_8, window_bounds = array<i64: 1, 32>}, {pipeline_mode = #tpu.pipeline_mode<synchronous>, transform_indices = @transform_9, window_bounds = array<i64: 1, 32>}, {transform_indices = @transform_10, window_bounds = array<i64: 1, 1>}, {transform_indices = @transform_11, window_bounds = array<i64: 8, 128>}]} {
    %c0 = arith.constant 0 : index
    %c0_0 = arith.constant 0 : index
    %0 = vector.load %arg1[%c0, %c0_0] : memref<8x32xf32, #tpu.memory_space<vmem>>, vector<8x32xf32>
    %cst = arith.constant dense<0.000000e+00> : vector<32xf32>
    %1 = vector.multi_reduction <add>, %0, %cst [0] : vector<8x32xf32> to vector<32xf32>
    %2 = vector.shape_cast %1 : vector<32xf32> to vector<1x32xf32>
    %cst_1 = arith.constant 8.000000e+00 : f32
    %3 = vector.broadcast %cst_1 : f32 to vector<1x32xf32>
    %4 = arith.divf %2, %3 : vector<1x32xf32>
    %5 = vector.broadcast %4 : vector<1x32xf32> to vector<8x32xf32>
    %6 = arith.subf %0, %5 : vector<8x32xf32>
    %7 = arith.mulf %6, %6 : vector<8x32xf32>
    %cst_2 = arith.constant dense<0.000000e+00> : vector<32xf32>
    %8 = vector.multi_reduction <add>, %7, %cst_2 [0] : vector<8x32xf32> to vector<32xf32>
    %9 = vector.shape_cast %8 : vector<32xf32> to vector<1x32xf32>
    %cst_3 = arith.constant 8.000000e+00 : f32
    %10 = vector.broadcast %cst_3 : f32 to vector<1x32xf32>
    %11 = arith.divf %9, %10 : vector<1x32xf32>
    %12 = vector.broadcast %4 : vector<1x32xf32> to vector<8x32xf32>
    %13 = arith.subf %0, %12 : vector<8x32xf32>
    %cst_4 = arith.constant 9.99999974E-6 : f32
    %14 = vector.broadcast %cst_4 : f32 to vector<1x32xf32>
    %15 = arith.addf %11, %14 : vector<1x32xf32>
    %16 = math.rsqrt %15 : vector<1x32xf32>
    %17 = vector.broadcast %16 : vector<1x32xf32> to vector<8x32xf32>
    %18 = arith.mulf %13, %17 : vector<8x32xf32>
    %c0_5 = arith.constant 0 : index
    %c0_6 = arith.constant 0 : index
    %19 = vector.load %arg3[%c0_5, %c0_6] : memref<1x32xf32, #tpu.memory_space<vmem>>, vector<1x32xf32>
    %20 = vector.broadcast %19 : vector<1x32xf32> to vector<8x32xf32>
    %21 = arith.mulf %18, %20 : vector<8x32xf32>
    %c0_7 = arith.constant 0 : index
    %c0_8 = arith.constant 0 : index
    %22 = vector.load %arg4[%c0_7, %c0_8] : memref<1x32xf32, #tpu.memory_space<vmem>>, vector<1x32xf32>
    %23 = vector.broadcast %22 : vector<1x32xf32> to vector<8x32xf32>
    %24 = arith.addf %21, %23 : vector<8x32xf32>
    %c0_9 = arith.constant 0 : index
    %c0_10 = arith.constant 0 : index
    %25 = vector.load %arg5[%c0_9, %c0_10] : memref<32x64xf32, #tpu.memory_space<vmem>>, vector<32x64xf32>
    %cst_11 = arith.constant dense<0.000000e+00> : vector<8x64xf32>
    %26 = tpu.matmul %24, %25, %cst_11 {dimension_numbers = #tpu.dot_dimension_numbers<[1], [0], [0], [1], [0, 0, 1, 1], [], []>} : vector<8x32xf32>, vector<32x64xf32>, vector<8x64xf32> -> vector<8x64xf32>
    %c0_12 = arith.constant 0 : index
    %c0_13 = arith.constant 0 : index
    %27 = vector.load %arg6[%c0_12, %c0_13] : memref<1x64xf32, #tpu.memory_space<vmem>>, vector<1x64xf32>
    %28 = vector.broadcast %27 : vector<1x64xf32> to vector<8x64xf32>
    %29 = arith.addf %26, %28 : vector<8x64xf32>
    %cst_14 = arith.constant 0.000000e+00 : f32
    %30 = vector.broadcast %cst_14 : f32 to vector<8x64xf32>
    %31 = arith.maximumf %29, %30 : vector<8x64xf32>
    %c0_15 = arith.constant 0 : index
    %c0_16 = arith.constant 0 : index
    %32 = vector.load %arg2[%c0_15, %c0_16] : memref<8x8xf32, #tpu.memory_space<vmem>>, vector<8x8xf32>
    %c0_17 = arith.constant 0 : index
    %c0_18 = arith.constant 0 : index
    %33 = vector.load %arg7[%c0_17, %c0_18] : memref<64x32xf32, #tpu.memory_space<vmem>>, vector<64x32xf32>
    %cst_19 = arith.constant dense<0.000000e+00> : vector<8x32xf32>
    %34 = tpu.matmul %31, %33, %cst_19 {dimension_numbers = #tpu.dot_dimension_numbers<[1], [0], [0], [1], [0, 0, 1, 1], [], []>} : vector<8x64xf32>, vector<64x32xf32>, vector<8x32xf32> -> vector<8x32xf32>
    %c0_20 = arith.constant 0 : index
    %c0_21 = arith.constant 0 : index
    %35 = vector.load %arg8[%c0_20, %c0_21] : memref<8x32xf32, #tpu.memory_space<vmem>>, vector<8x32xf32>
    %cst_22 = arith.constant dense<0.000000e+00> : vector<8x32xf32>
    %36 = tpu.matmul %32, %35, %cst_22 {dimension_numbers = #tpu.dot_dimension_numbers<[1], [0], [0], [1], [0, 0, 1, 1], [], []>} : vector<8x8xf32>, vector<8x32xf32>, vector<8x32xf32> -> vector<8x32xf32>
    %37 = arith.addf %34, %36 : vector<8x32xf32>
    %c0_23 = arith.constant 0 : index
    %c0_24 = arith.constant 0 : index
    %38 = vector.load %arg9[%c0_23, %c0_24] : memref<1x32xf32, #tpu.memory_space<vmem>>, vector<1x32xf32>
    %39 = vector.broadcast %38 : vector<1x32xf32> to vector<8x32xf32>
    %40 = arith.addf %37, %39 : vector<8x32xf32>
    %cst_25 = arith.constant 0.000000e+00 : f32
    %41 = vector.broadcast %cst_25 : f32 to vector<8x32xf32>
    %42 = arith.maximumf %40, %41 : vector<8x32xf32>
    %c0_26 = arith.constant 0 : index
    %c0_27 = arith.constant 0 : index
    %43 = vector.load %arg10[%c0_26, %c0_27] : memref<1x32xf32, #tpu.memory_space<vmem>>, vector<1x32xf32>
    %44 = vector.broadcast %43 : vector<1x32xf32> to vector<8x32xf32>
    %45 = arith.mulf %42, %44 : vector<8x32xf32>
    %cst_28 = arith.constant dense<0.000000e+00> : vector<8xf32>
    %46 = vector.multi_reduction <add>, %45, %cst_28 [1] : vector<8x32xf32> to vector<8xf32>
    %47 = vector.shape_cast %46 : vector<8xf32> to vector<8x1xf32>
    %c0_29 = arith.constant 0 : index
    %c0_30 = arith.constant 0 : index
    %48 = memref.load %arg11[%c0_29, %c0_30] : memref<1x1xf32, #tpu.memory_space<smem>>
    %49 = vector.broadcast %48 : f32 to vector<8x1xf32>
    %50 = arith.addf %47, %49 : vector<8x1xf32>
    %51 = vector.shape_cast %50 : vector<8x1xf32> to vector<8x1xf32>
    %52 = vector.broadcast %51 : vector<8x1xf32> to vector<8x128xf32>
    %c0_31 = arith.constant 0 : index
    %c0_32 = arith.constant 0 : index
    %53 = vector.load %arg12[%c0_31, %c0_32] : memref<8x128xf32, #tpu.memory_space<vmem>>, vector<8x128xf32>
    tpu.vector_store %arg12[%c0_31, %c0_32], %52 {strides = array<i32>} : memref<8x128xf32, #tpu.memory_space<vmem>>, vector<8x128xf32>,
    return
  }
  func.func @transform_0(%arg0: i32) -> (i32, i32) {
    %c0_i32 = arith.constant 0 : i32
    %c0_i32_0 = arith.constant 0 : i32
    return %arg0, %c0_i32 : i32, i32
  }
  func.func @transform_1(%arg0: i32) -> (i32, i32) {
    %c0_i32 = arith.constant 0 : i32
    %c0_i32_0 = arith.constant 0 : i32
    return %arg0, %c0_i32 : i32, i32
  }
  func.func @transform_2(%arg0: i32) -> (i32, i32) {
    %c0_i32 = arith.constant 0 : i32
    %c0_i32_0 = arith.constant 0 : i32
    %c0_i32_1 = arith.constant 0 : i32
    return %c0_i32, %c0_i32_0 : i32, i32
  }
  func.func @transform_3(%arg0: i32) -> (i32, i32) {
    %c0_i32 = arith.constant 0 : i32
    %c0_i32_0 = arith.constant 0 : i32
    %c0_i32_1 = arith.constant 0 : i32
    return %c0_i32, %c0_i32_0 : i32, i32
  }
  func.func @transform_4(%arg0: i32) -> (i32, i32) {
    %c0_i32 = arith.constant 0 : i32
    %c0_i32_0 = arith.constant 0 : i32
    %c0_i32_1 = arith.constant 0 : i32
    return %c0_i32, %c0_i32_0 : i32, i32
  }
  func.func @transform_5(%arg0: i32) -> (i32, i32) {
    %c0_i32 = arith.constant 0 : i32
    %c0_i32_0 = arith.constant 0 : i32
    %c0_i32_1 = arith.constant 0 : i32
    return %c0_i32, %c0_i32_0 : i32, i32
  }
  func.func @transform_6(%arg0: i32) -> (i32, i32) {
    %c0_i32 = arith.constant 0 : i32
    %c0_i32_0 = arith.constant 0 : i32
    %c0_i32_1 = arith.constant 0 : i32
    return %c0_i32, %c0_i32_0 : i32, i32
  }
  func.func @transform_7(%arg0: i32) -> (i32, i32) {
    %c0_i32 = arith.constant 0 : i32
    %c0_i32_0 = arith.constant 0 : i32
    %c0_i32_1 = arith.constant 0 : i32
    return %c0_i32, %c0_i32_0 : i32, i32
  }
  func.func @transform_8(%arg0: i32) -> (i32, i32) {
    %c0_i32 = arith.constant 0 : i32
    %c0_i32_0 = arith.constant 0 : i32
    %c0_i32_1 = arith.constant 0 : i32
    return %c0_i32, %c0_i32_0 : i32, i32
  }
  func.func @transform_9(%arg0: i32) -> (i32, i32) {
    %c0_i32 = arith.constant 0 : i32
    %c0_i32_0 = arith.constant 0 : i32
    %c0_i32_1 = arith.constant 0 : i32
    return %c0_i32, %c0_i32_0 : i32, i32
  }
  func.func @transform_10(%arg0: i32) -> (i32, i32) {
    %c0_i32 = arith.constant 0 : i32
    %c0_i32_0 = arith.constant 0 : i32
    %c0_i32_1 = arith.constant 0 : i32
    return %c0_i32, %c0_i32_0 : i32, i32
  }
  func.func @transform_11(%arg0: i32) -> (i32, i32) {
    %c0_i32 = arith.constant 0 : i32
    %c0_i32_0 = arith.constant 0 : i32
    return %arg0, %c0_i32 : i32, i32
  }
}

</mosaic_0001>

<llo_original>
// kernel: tpu_custom_call.1
$region0: #{tpu_custom_call.1}
  #allocation0 [shape = 'u32[]', space=smem, size = 0x4, offset = 0x4, fixed_abs, tag = 'smem constant byte address 0x4 - core index']
  #allocation1 [shape = 'u32[144,128]{1,0:T(1,128)}', space=vmem, size = 0x12000, scoped, tag = 'internal scratch']
  #allocation2 [shape = 'f32[1,1]{1,0:T(1,128)S(6)}', space=smem, size = 0x200, scoped, tag = 'scoped memory for tpu_custom_call.1']
  %s0 = inlined_call_operand.vmem [shape: f32[8,32], index: 0, kind: input, shape index: {}]
  %s1 = inlined_call_operand.vmem [shape: f32[8,8], index: 1, kind: input, shape index: {}]
  %s2 = inlined_call_operand.vmem [shape: f32[1,32], index: 2, kind: input, shape index: {}]
  %s3 = inlined_call_operand.vmem [shape: f32[1,32], index: 3, kind: input, shape index: {}]
  %s4 = inlined_call_operand.vmem [shape: f32[32,64], index: 4, kind: input, shape index: {}]
  %s5 = inlined_call_operand.vmem [shape: f32[1,64], index: 5, kind: input, shape index: {}]
  %s6 = inlined_call_operand.vmem [shape: f32[64,32], index: 6, kind: input, shape index: {}]
  %s7 = inlined_call_operand.vmem [shape: f32[8,32], index: 7, kind: input, shape index: {}]
  %s8 = inlined_call_operand.vmem [shape: f32[1,32], index: 8, kind: input, shape index: {}]
  %s9 = inlined_call_operand.vmem [shape: f32[1,32], index: 9, kind: input, shape index: {}]
  %s10 = inlined_call_operand.<no memory space> [shape: f32[1,1], index: 10, kind: input, shape index: {}]
  %s11 = inlined_call_operand.hbm [shape: f32[8,128], index: 11, kind: output, shape index: {}]
  %s12 = sld [smem:[#allocation0]]
  $region54: #{tpu_custom_call.1} parent=0
    _
  %s14 = ssub.s32 1, %s12
  %s15 = scalar_select 0, %s14, %s12
  %16 = sst [smem:[#allocation2]] %s10
  $region1: #{tpu_custom_call.1} parent=0
    #allocation3 [shape = 'u8[4096]{0}', space=vmem, size = 0x1000, scoped, tag = 'output window, operand 0, single buffered']
    #allocation4 [shape = 's32[1]{0}', space=sflag, size = 0x4, scoped, tag = 'scoped memory for tpu_custom_call.1']
    %17 = vsyncpa [#allocation4], 0
    // Predicated region
    $region2: #{tpu_custom_call.1} parent=1 // pred_check
      _
    $region3: #{tpu_custom_call.1} parent=1 // pred_check_branch
      %19 = sbr.rel (0) target = $region5
    $region4: #{tpu_custom_call.1} parent=1 // pred_region
      _
    $region5: #{tpu_custom_call.1} parent=1 // pred_fallthru
      _
    // Predicated region
    $region6: #{tpu_custom_call.1} parent=1 // pred_check
      _
    $region7: #{tpu_custom_call.1} parent=1 // pred_check_branch
      %21 = sbr.rel (0) target = $region9
    $region8: #{tpu_custom_call.1} parent=1 // pred_region
      _
    $region9: #{tpu_custom_call.1} parent=1 // pred_fallthru
      _
    // Predicated region
    $region10: #{tpu_custom_call.1} parent=1 // pred_check
      _
    $region11: #{tpu_custom_call.1} parent=1 // pred_check_branch
      %23 = sbr.rel (0) target = $region13
    $region12: #{tpu_custom_call.1} parent=1 // pred_region
      _
    $region13: #{tpu_custom_call.1} parent=1 // pred_fallthru
      _
    // Predicated region
    $region14: #{tpu_custom_call.1} parent=1 // pred_check
      _
    $region15: #{tpu_custom_call.1} parent=1 // pred_check_branch
      %25 = sbr.rel (0) target = $region17
    $region16: #{tpu_custom_call.1} parent=1 // pred_region
      _
    $region17: #{tpu_custom_call.1} parent=1 // pred_fallthru
      _
    // Predicated region
    $region18: #{tpu_custom_call.1} parent=1 // pred_check
      _
    $region19: #{tpu_custom_call.1} parent=1 // pred_check_branch
      %27 = sbr.rel (0) target = $region21
    $region20: #{tpu_custom_call.1} parent=1 // pred_region
      _
    $region21: #{tpu_custom_call.1} parent=1 // pred_fallthru
      _
    // Predicated region
    $region22: #{tpu_custom_call.1} parent=1 // pred_check
      _
    $region23: #{tpu_custom_call.1} parent=1 // pred_check_branch
      %29 = sbr.rel (0) target = $region25
    $region24: #{tpu_custom_call.1} parent=1 // pred_region
      _
    $region25: #{tpu_custom_call.1} parent=1 // pred_fallthru
      _
    // Predicated region
    $region26: #{tpu_custom_call.1} parent=1 // pred_check
      _
    $region27: #{tpu_custom_call.1} parent=1 // pred_check_branch
      %31 = sbr.rel (0) target = $region29
    $region28: #{tpu_custom_call.1} parent=1 // pred_region
      _
    $region29: #{tpu_custom_call.1} parent=1 // pred_fallthru
      _
    // Predicated region
    $region30: #{tpu_custom_call.1} parent=1 // pred_check
      _
    $region31: #{tpu_custom_call.1} parent=1 // pred_check_branch
      %33 = sbr.rel (0) target = $region33
    $region32: #{tpu_custom_call.1} parent=1 // pred_region
      _
    $region33: #{tpu_custom_call.1} parent=1 // pred_fallthru
      _
    // Predicated region
    $region34: #{tpu_custom_call.1} parent=1 // pred_check
      _
    $region35: #{tpu_custom_call.1} parent=1 // pred_check_branch
      %35 = sbr.rel (0) target = $region37
    $region36: #{tpu_custom_call.1} parent=1 // pred_region
      _
    $region37: #{tpu_custom_call.1} parent=1 // pred_fallthru
      _
    // Predicated region
    $region38: #{tpu_custom_call.1} parent=1 // pred_check
      _
    $region39: #{tpu_custom_call.1} parent=1 // pred_check_branch
      %37 = sbr.rel (0) target = $region41
    $region40: #{tpu_custom_call.1} parent=1 // pred_region
      _
    $region41: #{tpu_custom_call.1} parent=1 // pred_fallthru
      _
    // Predicated region
    $region42: #{tpu_custom_call.1} parent=1 // pred_check
      _
    $region43: #{tpu_custom_call.1} parent=1 // pred_check_branch
      %39 = sbr.rel (0) target = $region45
    $region44: #{tpu_custom_call.1} parent=1 // pred_region
      _
    $region45: #{tpu_custom_call.1} parent=1 // pred_fallthru
      _
    %v40 = vld [vmem:[%s0] sm:$0xff]
    %vm41 = vcmask 261120
    %v42 = vsel %vm41, %v40, 0.0
    %v43 = vrot.slane %v42, 4
    %v44 = vadd.f32 %v42, %v43
    %v45 = vrot.slane %v44, 2
    %v46 = vadd.f32 %v44, %v45
    %v47 = vrot.slane %v46, 1
    %v48 = vadd.f32 %v46, %v47
    %v49 = vrcp.pop 8.0
    %v50 = vmul.f32 %v48, %v49
    %v51 = vsub.f32 %v40, %v50
    %v52 = vmul.f32 %v51, %v51
    %v53 = vsel %vm41, %v52, 0.0
    %v54 = vrot.slane %v53, 4
    %v55 = vadd.f32 %v53, %v54
    %v56 = vrot.slane %v55, 2
    %v57 = vadd.f32 %v55, %v56
    %v58 = vrot.slane %v57, 1
    %v59 = vadd.f32 %v57, %v58
    %v60 = vmul.f32 %v59, %v49
    %v61 = vadd.f32 %v60, 1e-05
    %v62 = vrsqrt.pop %v61
    %v63 = vmul.f32 %v51, %v62
    %v64 = vld [vmem:[%s2] sm:$0x1]
    %v66 = vlaneseq
    %v67 = vshrl.u32 %v66, 7
    %v68 = vsub.s32 0, %v67
    %v69 = vrot.slane %v64, %v68
    %v71 = vmul.f32 %v63, %v69
    %v72 = vld [vmem:[%s3] sm:$0x1]
    %v74 = vlaneseq
    %v75 = vshrl.u32 %v74, 7
    %v76 = vsub.s32 0, %v75
    %v77 = vrot.slane %v72, %v76
    %v79 = vadd.f32 %v71, %v77
    %v80 = vld [vmem:[%s4] sm:$0xff]
    %v81 = vld [vmem:[%s4 + $0x8] sm:$0xff]
    %v82 = vld [vmem:[%s4 + $0x10] sm:$0xff]
    %v83 = vld [vmem:[%s4 + $0x18] sm:$0xff]
    %v84 = vld [vmem:[%s5] sm:$0x1]
    %v86 = vlaneseq
    %v87 = vshrl.u32 %v86, 7
    %v88 = vsub.s32 0, %v87
    %v89 = vrot.slane %v84, %v88
    %v92 = vsel %vm41, %v79, 0
    %94 = vmatprep.subr.mxu0 0.0
    %95 = vmatpush1.msra.mxu0 %v80
    %96 = vmatprep.subr.mxu0 0.0
    %97 = vmatpush1.msra.mxu0 %v81
    %98 = vmatprep.subr.mxu0 0.0
    %99 = vmatpush1.msra.mxu0 %v82
    %100 = vmatprep.subr.mxu0 0.0
    %101 = vmatpush1.msra.mxu0 %v83
    %102 = vmatprep.subr.mxu0 0.0
    %103 = vmatpush1.msra.mxu0 0.0
    %104 = vmatprep.subr.mxu0 0.0
    %105 = vmatpush1.msra.mxu0 0.0
    %106 = vmatprep.subr.mxu0 0.0
    %107 = vmatpush1.msra.mxu0 0.0
    %108 = vmatprep.subr.mxu0 0.0
    %109 = vmatpush1.msra.mxu0 0.0
    %110 = vmatprep.subr.mxu0 0.0
    %111 = vmatpush1.msra.mxu0 0.0
    %112 = vmatprep.subr.mxu0 0.0
    %113 = vmatpush1.msra.mxu0 0.0
    %114 = vmatprep.subr.mxu0 0.0
    %115 = vmatpush1.msra.mxu0 0.0
    %116 = vmatprep.subr.mxu0 0.0
    %117 = vmatpush1.msra.mxu0 0.0
    %118 = vmatprep.subr.mxu0 0.0
    %119 = vmatpush1.msra.mxu0 0.0
    %120 = vmatprep.subr.mxu0 0.0
    %121 = vmatpush1.msra.mxu0 0.0
    %122 = vmatprep.subr.mxu0 0.0
    %123 = vmatpush1.msra.mxu0 0.0
    %124 = vmatprep.subr.mxu0 0.0
    %125 = vmatpush1.msra.mxu0 0.0
    %126 = vmatprep.subr.mxu0 0.0
    %127 = vmatpush1.msra.mxu0 0.0
    %128 = vmatprep.subr.mxu0 0.0
    %129 = vmatpush1.msra.mxu0 0.0
    %130 = vmatprep.subr.mxu0 0.0
    %131 = vmatpush1.msra.mxu0 0.0
    %132 = vmatprep.subr.mxu0 0.0
    %133 = vmatpush1.msra.mxu0 0.0
    %134 = vmatprep.subr.mxu0 0.0
    %135 = vmatpush1.msra.mxu0 0.0
    %136 = vmatprep.subr.mxu0 0.0
    %137 = vmatpush1.msra.mxu0 0.0
    %138 = vmatprep.subr.mxu0 0.0
    %139 = vmatpush1.msra.mxu0 0.0
    %140 = vmatprep.subr.mxu0 0.0
    %141 = vmatpush1.msra.mxu0 0.0
    %142 = vmatprep.subr.mxu0 0.0
    %143 = vmatpush1.msra.mxu0 0.0
    %144 = vmatprep.subr.mxu0 0.0
    %145 = vmatpush1.msra.mxu0 0.0
    %146 = vmatprep.subr.mxu0 0.0
    %147 = vmatpush1.msra.mxu0 0.0
    %148 = vmatprep.subr.mxu0 0.0
    %149 = vmatpush1.msra.mxu0 0.0
    %150 = vmatprep.subr.mxu0 0.0
    %151 = vmatpush1.msra.mxu0 0.0
    %152 = vmatprep.subr.mxu0 0.0
    %153 = vmatpush1.msra.mxu0 0.0
    %154 = vmatprep.subr.mxu0 0.0
    %155 = vmatpush1.msra.mxu0 0.0
    %156 = vmatprep.subr.mxu0 0.0
    %157 = vmatpush1.msra.mxu0 0.0
    %158 = vmatprep.mubr.f32.mxu0 0.0
    %159 = vmatmul.mubr.f32.gmra.mrb[0].mxu0 %v92
    %v160 = vpop.f32.mrb[0].mxu0
    %v161 = vadd.f32 %v89, %v160
    %v162 = vpop.f32.mrb[0].mxu0
    %163 = vdwg.mxu0
    %v164 = vmax.f32 %v161, 0.0
    %v165 = vld [vmem:[%s1] sm:$0xff]
    %v166 = vld [vmem:[%s6] sm:$0xff]
    %v167 = vld [vmem:[%s6 + $0x8] sm:$0xff]
    %v168 = vld [vmem:[%s6 + $0x10] sm:$0xff]
    %v169 = vld [vmem:[%s6 + $0x18] sm:$0xff]
    %v170 = vld [vmem:[%s6 + $0x20] sm:$0xff]
    %v171 = vld [vmem:[%s6 + $0x28] sm:$0xff]
    %v172 = vld [vmem:[%s6 + $0x30] sm:$0xff]
    %v173 = vld [vmem:[%s6 + $0x38] sm:$0xff]
    %v174 = vld [vmem:[%s7] sm:$0xff]
    %vm175 = vcmask 64512
    %v177 = vsel %vm175, %v165, 0
    %179 = vmatprep.subr.mxu0 0.0
    %180 = vmatpush1.msra.mxu0 %v174
    %181 = vmatprep.subr.mxu0 0.0
    %182 = vmatpush1.msra.mxu0 0.0
    %183 = vmatprep.subr.mxu0 0.0
    %184 = vmatpush1.msra.mxu0 0.0
    %185 = vmatprep.subr.mxu0 0.0
    %186 = vmatpush1.msra.mxu0 0.0
    %187 = vmatprep.subr.mxu0 0.0
    %188 = vmatpush1.msra.mxu0 0.0
    %189 = vmatprep.subr.mxu0 0.0
    %190 = vmatpush1.msra.mxu0 0.0
    %191 = vmatprep.subr.mxu0 0.0
    %192 = vmatpush1.msra.mxu0 0.0
    %193 = vmatprep.subr.mxu0 0.0
    %194 = vmatpush1.msra.mxu0 0.0
    %195 = vmatprep.subr.mxu0 0.0
    %196 = vmatpush1.msra.mxu0 0.0
    %197 = vmatprep.subr.mxu0 0.0
    %198 = vmatpush1.msra.mxu0 0.0
    %199 = vmatprep.subr.mxu0 0.0
    %200 = vmatpush1.msra.mxu0 0.0
    %201 = vmatprep.subr.mxu0 0.0
    %202 = vmatpush1.msra.mxu0 0.0
    %203 = vmatprep.subr.mxu0 0.0
    %204 = vmatpush1.msra.mxu0 0.0
    %205 = vmatprep.subr.mxu0 0.0
    %206 = vmatpush1.msra.mxu0 0.0
    %207 = vmatprep.subr.mxu0 0.0
    %208 = vmatpush1.msra.mxu0 0.0
    %209 = vmatprep.subr.mxu0 0.0
    %210 = vmatpush1.msra.mxu0 0.0
    %211 = vmatprep.subr.mxu0 0.0
    %212 = vmatpush1.msra.mxu0 0.0
    %213 = vmatprep.subr.mxu0 0.0
    %214 = vmatpush1.msra.mxu0 0.0
    %215 = vmatprep.subr.mxu0 0.0
    %216 = vmatpush1.msra.mxu0 0.0
    %217 = vmatprep.subr.mxu0 0.0
    %218 = vmatpush1.msra.mxu0 0.0
    %219 = vmatprep.subr.mxu0 0.0
    %220 = vmatpush1.msra.mxu0 0.0
    %221 = vmatprep.subr.mxu0 0.0
    %222 = vmatpush1.msra.mxu0 0.0
    %223 = vmatprep.subr.mxu0 0.0
    %224 = vmatpush1.msra.mxu0 0.0
    %225 = vmatprep.subr.mxu0 0.0
    %226 = vmatpush1.msra.mxu0 0.0
    %227 = vmatprep.subr.mxu0 0.0
    %228 = vmatpush1.msra.mxu0 0.0
    %229 = vmatprep.subr.mxu0 0.0
    %230 = vmatpush1.msra.mxu0 0.0
    %231 = vmatprep.subr.mxu0 0.0
    %232 = vmatpush1.msra.mxu0 0.0
    %233 = vmatprep.subr.mxu0 0.0
    %234 = vmatpush1.msra.mxu0 0.0
    %235 = vmatprep.subr.mxu0 0.0
    %236 = vmatpush1.msra.mxu0 0.0
    %237 = vmatprep.subr.mxu0 0.0
    %238 = vmatpush1.msra.mxu0 0.0
    %239 = vmatprep.subr.mxu0 0.0
    %240 = vmatpush1.msra.mxu0 0.0
    %241 = vmatprep.subr.mxu0 0.0
    %242 = vmatpush1.msra.mxu0 0.0
    %243 = vmatprep.mubr.f32.mxu0 0.0
    %244 = vmatmul.mubr.f32.gmra.mrb[0].mxu0 %v177
    %v245 = vpop.f32.mrb[0].mxu0
    %v246 = vadd.f32 0.0, %v245
    %v247 = vpop.f32.mrb[0].mxu0
    %248 = vdwg.mxu0
    %vm249 = vcmask 523264
    %v251 = vsel %vm249, %v164, 0
    %253 = vmatprep.subr.mxu0 0.0
    %254 = vmatpush1.msra.mxu0 %v166
    %255 = vmatprep.subr.mxu0 0.0
    %256 = vmatpush1.msra.mxu0 %v167
    %257 = vmatprep.subr.mxu0 0.0
    %258 = vmatpush1.msra.mxu0 %v168
    %259 = vmatprep.subr.mxu0 0.0
    %260 = vmatpush1.msra.mxu0 %v169
    %261 = vmatprep.subr.mxu0 0.0
    %262 = vmatpush1.msra.mxu0 %v170
    %263 = vmatprep.subr.mxu0 0.0
    %264 = vmatpush1.msra.mxu0 %v171
    %265 = vmatprep.subr.mxu0 0.0
    %266 = vmatpush1.msra.mxu0 %v172
    %267 = vmatprep.subr.mxu0 0.0
    %268 = vmatpush1.msra.mxu0 %v173
    %269 = vmatprep.subr.mxu0 0.0
    %270 = vmatpush1.msra.mxu0 0.0
    %271 = vmatprep.subr.mxu0 0.0
    %272 = vmatpush1.msra.mxu0 0.0
    %273 = vmatprep.subr.mxu0 0.0
    %274 = vmatpush1.msra.mxu0 0.0
    %275 = vmatprep.subr.mxu0 0.0
    %276 = vmatpush1.msra.mxu0 0.0
    %277 = vmatprep.subr.mxu0 0.0
    %278 = vmatpush1.msra.mxu0 0.0
    %279 = vmatprep.subr.mxu0 0.0
    %280 = vmatpush1.msra.mxu0 0.0
    %281 = vmatprep.subr.mxu0 0.0
    %282 = vmatpush1.msra.mxu0 0.0
    %283 = vmatprep.subr.mxu0 0.0
    %284 = vmatpush1.msra.mxu0 0.0
    %285 = vmatprep.subr.mxu0 0.0
    %286 = vmatpush1.msra.mxu0 0.0
    %287 = vmatprep.subr.mxu0 0.0
    %288 = vmatpush1.msra.mxu0 0.0
    %289 = vmatprep.subr.mxu0 0.0
    %290 = vmatpush1.msra.mxu0 0.0
    %291 = vmatprep.subr.mxu0 0.0
    %292 = vmatpush1.msra.mxu0 0.0
    %293 = vmatprep.subr.mxu0 0.0
    %294 = vmatpush1.msra.mxu0 0.0
    %295 = vmatprep.subr.mxu0 0.0
    %296 = vmatpush1.msra.mxu0 0.0
    %297 = vmatprep.subr.mxu0 0.0
    %298 = vmatpush1.msra.mxu0 0.0
    %299 = vmatprep.subr.mxu0 0.0
    %300 = vmatpush1.msra.mxu0 0.0
    %301 = vmatprep.subr.mxu0 0.0
    %302 = vmatpush1.msra.mxu0 0.0
    %303 = vmatprep.subr.mxu0 0.0
    %304 = vmatpush1.msra.mxu0 0.0
    %305 = vmatprep.subr.mxu0 0.0
    %306 = vmatpush1.msra.mxu0 0.0
    %307 = vmatprep.subr.mxu0 0.0
    %308 = vmatpush1.msra.mxu0 0.0
    %309 = vmatprep.subr.mxu0 0.0
    %310 = vmatpush1.msra.mxu0 0.0
    %311 = vmatprep.subr.mxu0 0.0
    %312 = vmatpush1.msra.mxu0 0.0
    %313 = vmatprep.subr.mxu0 0.0
    %314 = vmatpush1.msra.mxu0 0.0
    %315 = vmatprep.subr.mxu0 0.0
    %316 = vmatpush1.msra.mxu0 0.0
    %317 = vmatprep.mubr.f32.mxu0 0.0
    %318 = vmatmul.mubr.f32.gmra.mrb[0].mxu0 %v251
    %v319 = vpop.f32.mrb[0].mxu0
    %v320 = vadd.f32 %v246, %v319
    %v321 = vpop.f32.mrb[0].mxu0
    %322 = vdwg.mxu0
    %v323 = vld [vmem:[%s8] sm:$0x1]
    %v325 = vlaneseq
    %v326 = vshrl.u32 %v325, 7
    %v327 = vsub.s32 0, %v326
    %v328 = vrot.slane %v323, %v327
    %v330 = vadd.f32 %v320, %v328
    %v331 = vmax.f32 %v330, 0.0
    %v332 = vld [vmem:[%s9] sm:$0x1]
    %v334 = vlaneseq
    %v335 = vshrl.u32 %v334, 7
    %v336 = vsub.s32 0, %v335
    %v337 = vrot.slane %v332, %v336
    %v339 = vmul.f32 %v331, %v337
    %v340 = vsel %vm41, %v339, 0.0
    %341 = vadd.xlane.f32.xlu0 %v340
    %v342 = vpop.xlane.xlu0 %341
    %s343 = sld [smem:[#allocation2]]
    %v344 = vstv %s343
    %v345 = vadd.f32 %v342, %v344
    %346 = vst [vmem:[#allocation3] sm:$0xff] %v345
    // Predicated region
    $region46: #{tpu_custom_call.1} parent=1 // pred_check
      _
    $region47: #{tpu_custom_call.1} parent=1 // pred_check_branch
      %348 = sbr.rel (0) target = $region49
    $region48: #{tpu_custom_call.1} parent=1 // pred_region
      %s350 = ssub.s32 128, 128
      %351 = vsyncadd [#allocation4], %s350
      %s353 = sshll.u32 [#allocation3], 4
      %s354 = int_to_ptr.vmem [resolvable:$true] %s353
      %356 = dma.vmem_to_hbm [thread:$0]  %s354, 128, %s11, [#allocation4]
    $region49: #{tpu_custom_call.1} parent=1 // pred_fallthru
      _
    // Predicated region
    $region50: #{tpu_custom_call.1} parent=1 // pred_check
      _
    $region51: #{tpu_custom_call.1} parent=1 // pred_check_branch
      %358 = sbr.rel (0) target = $region53
    $region52: #{tpu_custom_call.1} parent=1 // pred_region
      %359 = dma.done [#allocation4], 128
    $region53: #{tpu_custom_call.1} parent=1 // pred_fallthru
      _
    %360 = vsyncpa [#allocation4], 1

</llo_original>
